<compile_context>
chip_gen: v5e
topology: v5e:2x2
jax: 0.10.0
libtpu: 0.0.40
codegen_flags: <defaults>
</compile_context>

<pallas_src>
import functools

import jax
import jax.numpy as jnp
from jax import lax
from jax.experimental import pallas as pl
from jax.experimental.pallas import tpu as pltpu


def _ceil_div(a, b):
    return -(-a // b)


def _vmem_capacity_bytes():
    try:
        return int(pltpu.get_tpu_info().vmem_capacity_bytes)
    except Exception:
        return 64 * 1024 * 1024  # conservative (v7x)


# ----------------------------- single-pass kernel ---------------------------
def _frn_kernel(x_ref, gb_ref, o_ref, *, inv_s, abs_eps):
    # x_ref/o_ref: (R, S) tiles; gb_ref: (R, 2) f32 -> [:, 0]=gamma, [:, 1]=beta
    x = x_ref[...].astype(jnp.float32)
    nu2 = jnp.sum(x * x, axis=-1, keepdims=True) * inv_s            # (R, 1)
    scale = gb_ref[:, 0:1] * lax.rsqrt(nu2 + abs_eps)                # fold gamma
    o_ref[...] = (x * scale + gb_ref[:, 1:2]).astype(o_ref.dtype)


# ----------------------------- two-pass kernels ------------------------------
def _frn_sumsq_kernel(x_ref, ss_ref, *, s_total, ts, need_mask):
    # Accumulate per-row sum of squares over the S ("arbitrary", last) grid axis.
    j = pl.program_id(1)
    x = x_ref[...].astype(jnp.float32)
    if need_mask:  # zero the garbage lanes of the partial last S block
        col = j * ts + lax.broadcasted_iota(jnp.int32, x.shape, 1)
        x = jnp.where(col < s_total, x, 0.0)

    @pl.when(j == 0)
    def _():
        ss_ref[...] = jnp.zeros_like(ss_ref)

    ss_ref[...] += jnp.sum(x * x, axis=-1, keepdims=True)


def _frn_norm_kernel(ss_ref, gb_ref, x_ref, o_ref, *, inv_s, abs_eps):
    nu2 = ss_ref[...] * inv_s                                        # (R, 1)
    scale = gb_ref[:, 0:1] * lax.rsqrt(nu2 + abs_eps)
    o_ref[...] = (x_ref[...].astype(jnp.float32) * scale
                  + gb_ref[:, 1:2]).astype(o_ref.dtype)


# --------------------------------- wrapper -----------------------------------
def frn_forward(x, weight, bias, eps, *, tile_budget_bytes=None):
    """FRN forward. x: [B, C, Z, H, W]; weight/bias: per-channel; eps: scalar."""
    B, C, Z, H, W = x.shape
    S = Z * H * W
    N = B * C
    itemsize = jnp.dtype(x.dtype).itemsize
    abs_eps = abs(float(eps))
    inv_s = 1.0 / S

    x2 = x.reshape(N, S)                                   # lane-dense view

    # Packed per-row (gamma, beta): (N, 2) f32, broadcast channel params over B.
    w_f = jnp.reshape(weight, (C,)).astype(jnp.float32)
    b_f = jnp.reshape(bias, (C,)).astype(jnp.float32)
    gb = jnp.broadcast_to(jnp.stack([w_f, b_f], axis=-1)[None], (B, C, 2)).reshape(N, 2)

    # --- per-generation sizing ----------------------------------------------
    vmem_cap = _vmem_capacity_bytes()
    if tile_budget_bytes is None:
        tile_budget_bytes = max(1 << 20, vmem_cap // 32)   # ~2 MiB v7x, ~4 MiB v5e/v6e
    vmem_limit = max(32 * 1024 * 1024, (vmem_cap * 3) // 4)

    sublane = {1: 32, 2: 16}.get(itemsize, 8)
    r_budget = tile_budget_bytes // (S * itemsize)

    cparams = lambda sem: pltpu.CompilerParams(
        dimension_semantics=sem, vmem_limit_bytes=vmem_limit)

    if r_budget >= sublane:
        # ----------------- single pass: full-S rows per block ----------------
        R = (r_budget // sublane) * sublane
        # keep >= ~8 row blocks when N allows (v7x megacore + pipeline depth)
        r_cap = max(sublane, _ceil_div(_ceil_div(N, 8), sublane) * sublane)
        R = min(R, r_cap)
        grid = (_ceil_div(N, R),)

        out2 = pl.pallas_call(
            functools.partial(_frn_kernel, inv_s=inv_s, abs_eps=abs_eps),
            out_shape=jax.ShapeDtypeStruct((N, S), x.dtype),
            grid=grid,
            in_specs=[pl.BlockSpec((R, S), lambda i: (i, 0)),
                      pl.BlockSpec((R, 2), lambda i: (i, 0))],
            out_specs=pl.BlockSpec((R, S), lambda i: (i, 0)),
            compiler_params=cparams(("parallel",)),
        )(x2, gb)
    else:
        # ----------------- two-pass S-tiled path (huge Z*H*W) ----------------
        R = sublane
        nr = _ceil_div(N, R)
        if S < 128:
            TS = S
        else:
            ts_budget = max(128, tile_budget_bytes // (R * itemsize))
            TS = max(128, min((ts_budget // 128) * 128, (S // 128) * 128))
        ns = _ceil_div(S, TS)
        need_mask = (S % TS) != 0

        # Pass 1: per-row sum of squares, accumulated in the output block.
        ss = pl.pallas_call(
            functools.partial(_frn_sumsq_kernel, s_total=S, ts=TS,
                              need_mask=need_mask),
            out_shape=jax.ShapeDtypeStruct((N, 1), jnp.float32),
            grid=(nr, ns),
            in_specs=[pl.BlockSpec((R, TS), lambda i, j: (i, j))],
            out_specs=pl.BlockSpec((R, 1), lambda i, j: (i, 0)),
            compiler_params=cparams(("parallel", "arbitrary")),
        )(x2)

        # Pass 2: normalize + affine.
        out2 = pl.pallas_call(
            functools.partial(_frn_norm_kernel, inv_s=inv_s, abs_eps=abs_eps),
            out_shape=jax.ShapeDtypeStruct((N, S), x.dtype),
            grid=(nr, ns),
            in_specs=[pl.BlockSpec((R, 1), lambda i, j: (i, 0)),
                      pl.BlockSpec((R, 2), lambda i, j: (i, 0)),
                      pl.BlockSpec((R, TS), lambda i, j: (i, j))],
            out_specs=pl.BlockSpec((R, TS), lambda i, j: (i, j)),
            compiler_params=cparams(("parallel", "parallel")),
        )(ss, gb, x2)

    return out2.reshape(B, C, Z, H, W)


# --------------------------------- reference ---------------------------------
def frn_reference(x, weight, bias, eps):
    xf = x.astype(jnp.float32)
    nu2 = jnp.mean(xf * xf, axis=(2, 3, 4), keepdims=True)
    y = xf * lax.rsqrt(nu2 + jnp.abs(jnp.asarray(eps, jnp.float32)))
    w = jnp.reshape(weight, (1, -1, 1, 1, 1)).astype(jnp.float32)
    b = jnp.reshape(bias, (1, -1, 1, 1, 1)).astype(jnp.float32)
    return (w * y + b).astype(x.dtype)


def _run_case(key, shape, eps, tile_budget_bytes=None):
    B, C = shape[0], shape[1]
    kx, kw, kb = jax.random.split(key, 3)
    x = jax.random.normal(kx, shape, dtype=jnp.float32)
    # FRN.reset_parameters() -> gamma=1, beta=0; perturb so the affine path is
    # actually exercised.
    weight = 1.0 + 0.1 * jax.random.normal(kw, (C,), dtype=jnp.float32)
    bias = 0.1 * jax.random.normal(kb, (C,), dtype=jnp.float32)

    out = frn_forward(x, weight, bias, eps, tile_budget_bytes=tile_budget_bytes)
    jax.block_until_ready(out)

    ref = frn_reference(x, weight, bias, eps)
    assert out.shape == x.shape and out.dtype == x.dtype
    assert jnp.allclose(out, ref, atol=1e-5, rtol=1e-5), (
        f"mismatch for shape={shape}, budget={tile_budget_bytes}")


if __name__ == "__main__":
    eps = 1e-6  # non-learnable buffer in the reference module
    key = jax.random.PRNGKey(0)
    k1, k2, k3, k4 = jax.random.split(key, 4)

    # Primary small case (B, C, Z, H, W) -> single-pass path, grid of 1.
    _run_case(k1, (2, 4, 8, 8, 8), eps)
    # Odd sizes -> single-pass, partial last row block (masked writes) and
    # non-multiple-of-128 lane extent.
    _run_case(k2, (3, 5, 4, 6, 7), eps)
    # Forced tiny tile budget -> two-pass S-tiled path, S % TS == 0.
    _run_case(k3, (2, 4, 4, 8, 16), eps, tile_budget_bytes=8 * 1024)
    # Forced tiny tile budget -> two-pass path with partial S *and* row blocks
    # (exercises the lane mask in the sum-of-squares pass).
    _run_case(k4, (3, 5, 4, 6, 7), eps, tile_budget_bytes=4 * 1024)

    print("KERNEL_OK")
</pallas_src>

<mosaic_0001>
module attributes {stable_mosaic.version = 11 : i64} {
  func.func @_frn_kernel(%arg0: i32, %arg1: memref<8x512xf32, #tpu.memory_space<vmem>>, %arg2: memref<8x2xf32, #tpu.memory_space<vmem>>, %arg3: memref<8x512xf32, #tpu.memory_space<vmem>>) attributes {dimension_semantics = [#tpu.dimension_semantics<parallel>], iteration_bounds = array<i64: 1>, scalar_prefetch = 0 : i64, scratch_operands = 0 : i64, tpu.core_type = #tpu.core_type<tc>, window_params = [{transform_indices = @transform_0, window_bounds = array<i64: 8, 512>}, {transform_indices = @transform_1, window_bounds = array<i64: 8, 2>}, {transform_indices = @transform_2, window_bounds = array<i64: 8, 512>}]} {
    %c0 = arith.constant 0 : index
    %c0_0 = arith.constant 0 : index
    %0 = vector.load %arg1[%c0, %c0_0] : memref<8x512xf32, #tpu.memory_space<vmem>>, vector<8x512xf32>
    %1 = arith.mulf %0, %0 : vector<8x512xf32>
    %cst = arith.constant dense<0.000000e+00> : vector<8xf32>
    %2 = vector.multi_reduction <add>, %1, %cst [1] : vector<8x512xf32> to vector<8xf32>
    %3 = vector.shape_cast %2 : vector<8xf32> to vector<8x1xf32>
    %cst_1 = arith.constant 0.001953125 : f32
    %4 = vector.broadcast %cst_1 : f32 to vector<8x1xf32>
    %5 = arith.mulf %3, %4 : vector<8x1xf32>
    %c0_2 = arith.constant 0 : index
    %c0_3 = arith.constant 0 : index
    %6 = vector.load %arg2[%c0_2, %c0_3] : memref<8x2xf32, #tpu.memory_space<vmem>>, vector<8x1xf32>
    %cst_4 = arith.constant 9.99999997E-7 : f32
    %7 = vector.broadcast %cst_4 : f32 to vector<8x1xf32>
    %8 = arith.addf %5, %7 : vector<8x1xf32>
    %9 = math.rsqrt %8 : vector<8x1xf32>
    %10 = arith.mulf %6, %9 : vector<8x1xf32>
    %11 = vector.broadcast %10 : vector<8x1xf32> to vector<8x512xf32>
    %12 = arith.mulf %0, %11 : vector<8x512xf32>
    %c0_5 = arith.constant 0 : index
    %c1 = arith.constant 1 : index
    %13 = vector.load %arg2[%c0_5, %c1] : memref<8x2xf32, #tpu.memory_space<vmem>>, vector<8x1xf32>
    %14 = vector.broadcast %13 : vector<8x1xf32> to vector<8x512xf32>
    %15 = arith.addf %12, %14 : vector<8x512xf32>
    %c0_6 = arith.constant 0 : index
    %c0_7 = arith.constant 0 : index
    %16 = vector.load %arg3[%c0_6, %c0_7] : memref<8x512xf32, #tpu.memory_space<vmem>>, vector<8x512xf32>
    tpu.vector_store %arg3[%c0_6, %c0_7], %15 {strides = array<i32>} : memref<8x512xf32, #tpu.memory_space<vmem>>, vector<8x512xf32>,
    return
  }
  func.func @transform_0(%arg0: i32) -> (i32, i32) {
    %c0_i32 = arith.constant 0 : i32
    %c0_i32_0 = arith.constant 0 : i32
    return %arg0, %c0_i32 : i32, i32
  }
  func.func @transform_1(%arg0: i32) -> (i32, i32) {
    %c0_i32 = arith.constant 0 : i32
    %c0_i32_0 = arith.constant 0 : i32
    return %arg0, %c0_i32 : i32, i32
  }
  func.func @transform_2(%arg0: i32) -> (i32, i32) {
    %c0_i32 = arith.constant 0 : i32
    %c0_i32_0 = arith.constant 0 : i32
    return %arg0, %c0_i32 : i32, i32
  }
}

</mosaic_0001>

<llo_original>
// kernel: tpu_custom_call.1
$region0: #{tpu_custom_call.1}
  #allocation0 [shape = 'u32[]', space=smem, size = 0x4, offset = 0x4, fixed_abs, tag = 'smem constant byte address 0x4 - core index']
  #allocation1 [shape = 'u32[72,128]{1,0:T(1,128)}', space=vmem, size = 0x9000, scoped, tag = 'internal scratch']
  %s0 = inlined_call_operand.hbm [shape: f32[8,512], index: 0, kind: input, shape index: {}]
  %s1 = inlined_call_operand.vmem [shape: f32[8,2], index: 1, kind: input, shape index: {}]
  %s2 = inlined_call_operand.hbm [shape: f32[8,512], index: 2, kind: output, shape index: {}]
  %s3 = sld [smem:[#allocation0]]
  $region22: #{tpu_custom_call.1} parent=0
    _
  %s5 = ssub.s32 1, %s3
  %s6 = scalar_select 0, %s5, %s3
  $region1: #{tpu_custom_call.1} parent=0
    #allocation2 [shape = 'u8[16384]{0}', space=vmem, size = 0x4000, scoped, tag = 'input window, operand 0, single buffered']
    #allocation3 [shape = 's32[1]{0}', space=sflag, size = 0x4, scoped, tag = 'scoped memory for tpu_custom_call.1']
    #allocation4 [shape = 's32[1]{0}', space=sflag, size = 0x4, scoped, tag = 'scoped memory for tpu_custom_call.1']
    #allocation5 [shape = 'u8[16384]{0}', space=vmem, size = 0x4000, scoped, tag = 'output window, operand 0, single buffered']
    %7 = vsyncpa [#allocation3], 0
    %8 = vsyncpa [#allocation4], 0
    // Predicated region
    $region2: #{tpu_custom_call.1} parent=1 // pred_check
      _
    $region3: #{tpu_custom_call.1} parent=1 // pred_check_branch
      %10 = sbr.rel (0) target = $region5
    $region4: #{tpu_custom_call.1} parent=1 // pred_region
      %12 = vsyncadd [#allocation3], 0
      %s14 = sshll.u32 %s0, 4
      %s15 = int_to_ptr.hbm [resolvable:$true] %s14
      %s16 = sshll.u32 [#allocation2], 4
      %s17 = int_to_ptr.vmem [resolvable:$true] %s16
      %19 = dma.hbm_to_vmem [thread:$0]  %s15, 512, %s17, [#allocation3]
    $region5: #{tpu_custom_call.1} parent=1 // pred_fallthru
      _
    // Predicated region
    $region6: #{tpu_custom_call.1} parent=1 // pred_check
      _
    $region7: #{tpu_custom_call.1} parent=1 // pred_check_branch
      %21 = sbr.rel (0) target = $region9
    $region8: #{tpu_custom_call.1} parent=1 // pred_region
      _
    $region9: #{tpu_custom_call.1} parent=1 // pred_fallthru
      _
    // Predicated region
    $region10: #{tpu_custom_call.1} parent=1 // pred_check
      _
    $region11: #{tpu_custom_call.1} parent=1 // pred_check_branch
      %23 = sbr.rel (0) target = $region13
    $region12: #{tpu_custom_call.1} parent=1 // pred_region
      %25 = dma.done [#allocation3], 512
    $region13: #{tpu_custom_call.1} parent=1 // pred_fallthru
      _
    %v26 = vld [vmem:[#allocation2] sm:$0xff]
    %v27 = vld [vmem:[#allocation2 + $0x8] sm:$0xff]
    %v28 = vld [vmem:[#allocation2 + $0x10] sm:$0xff]
    %v29 = vld [vmem:[#allocation2 + $0x18] sm:$0xff]
    %v30 = vmul.f32 %v26, %v26
    %v31 = vmul.f32 %v27, %v27
    %v32 = vmul.f32 %v28, %v28
    %v33 = vmul.f32 %v29, %v29
    %v34 = vadd.f32 %v30, %v31
    %v35 = vadd.f32 %v34, %v32
    %v36 = vadd.f32 %v35, %v33
    %37 = vadd.xlane.f32.xlu0 %v36
    %v38 = vpop.xlane.xlu0 %37
    %v39 = vmul.f32 %v38, 0.001953125
    %v40 = vld [vmem:[%s1] sm:$0xff]
    %v41 = vadd.f32 %v39, 1e-06
    %v42 = vrsqrt.pop %v41
    %v43 = vmul.f32 %v42, %v41
    %v44 = vmul.f32 %v43, %v42
    %v45 = vmul.f32 0.5, %v44
    %v46 = vsub.f32 1.5, %v45
    %v47 = vmul.f32 %v42, %v46
    %vm48 = vweird.f32 %v41
    %vm49 = vweird.f32 %v42
    %vm50 = vmor %vm48, %vm49
    %v51 = vsel %vm50, %v42, %v47
    %v52 = vmul.f32 %v40, %v51
    %54 = vset.pattern.permute.xlu0 0
    %55 = vperm.xlu0 %54, %v52
    %v56 = vpop.permute.xlu0 %55
    %v58 = vmul.f32 %v26, %v56
    %v59 = vmul.f32 %v27, %v56
    %v60 = vmul.f32 %v28, %v56
    %v61 = vmul.f32 %v29, %v56
    %63 = vset.pattern.permute.xlu0 1
    %64 = vperm.xlu0 %63, %v40
    %v65 = vpop.permute.xlu0 %64
    %v67 = vadd.f32 %v58, %v65
    %v68 = vadd.f32 %v59, %v65
    %v69 = vadd.f32 %v60, %v65
    %v70 = vadd.f32 %v61, %v65
    %71 = vst [vmem:[#allocation5] sm:$0xff] %v67
    %72 = vst [vmem:[#allocation5 + $0x8] sm:$0xff] %v68
    %73 = vst [vmem:[#allocation5 + $0x10] sm:$0xff] %v69
    %74 = vst [vmem:[#allocation5 + $0x18] sm:$0xff] %v70
    // Predicated region
    $region14: #{tpu_custom_call.1} parent=1 // pred_check
      _
    $region15: #{tpu_custom_call.1} parent=1 // pred_check_branch
      %76 = sbr.rel (0) target = $region17
    $region16: #{tpu_custom_call.1} parent=1 // pred_region
      %78 = vsyncadd [#allocation4], 0
      %s80 = sshll.u32 [#allocation5], 4
      %s81 = int_to_ptr.vmem [resolvable:$true] %s80
      %s82 = sshll.u32 %s2, 4
      %s83 = int_to_ptr.hbm [resolvable:$true] %s82
      %85 = dma.vmem_to_hbm [thread:$0]  %s81, 512, %s83, [#allocation4]
    $region17: #{tpu_custom_call.1} parent=1 // pred_fallthru
      _
    // Predicated region
    $region18: #{tpu_custom_call.1} parent=1 // pred_check
      _
    $region19: #{tpu_custom_call.1} parent=1 // pred_check_branch
      %87 = sbr.rel (0) target = $region21
    $region20: #{tpu_custom_call.1} parent=1 // pred_region
      %89 = dma.done [#allocation4], 512
    $region21: #{tpu_custom_call.1} parent=1 // pred_fallthru
      _
    %90 = vsyncpa [#allocation3], 1
    %91 = vsyncpa [#allocation4], 1

</llo_original>
